<compile_context>
chip_gen: v7x
topology: tpu7x:2x2x1
jax: 0.10.0
libtpu: 0.0.40
codegen_flags: <defaults>
</compile_context>

<pallas_src>
import functools

import jax
import jax.numpy as jnp
import numpy as np
from jax import lax
from jax.experimental import pallas as pl
from jax.experimental.pallas import tpu as pltpu


def _round_up(x, m):
    return (x + m - 1) // m * m


def _pick_row_tile(OH, OW, SW, C4, OCp, in_bytes, out_bytes, budget_bytes=8 * 2**20):
    """Largest OH-divisor row tile whose double-buffered blocks fit the VMEM budget.

    Prefers >= 2 row tiles (pipeline depth + work for both v7x TensorCores). Multi-tile
    choices must keep the flat output block (TM*OW) a multiple of 8 sublanes; a single
    tile is exempt (block == full array dim).
    """

    def fp(d):  # double-buffered per-step input + output block bytes
        return 2 * ((d + 1) * SW * C4 * in_bytes + d * OW * OCp * out_bytes)

    divs = [d for d in range(1, OH + 1) if OH % d == 0]
    ok = [d for d in divs if OH // d == 1 or (d * OW) % 8 == 0]
    fit = [d for d in ok if fp(d) <= budget_bytes] or [min(ok)]
    multi = [d for d in fit if OH // d >= 2]
    return max(multi) if multi else max(fit)


def _make_downsample_kernel(TM, OW, SW, C4, OCp):
    """Stride-1 2x2 'super' conv over the space-to-depth phase image.

    x_ref:    (1, TM, SW, C4)   main super-rows of this row tile (C4 = 4*C phase channels)
    halo_ref: (1, 1,  SW, C4)   next super-row (dh=1 taps of the tile's last output row)
    w_ref:    (4*C4, OCp)       tap-major flat weight slab, tap = 2*dh + dw
    b_ref:    (1, OCp)          f32 bias, zero-padded to lane-dense OCp
    o_ref:    (1, TM*OW, OCp)   flat, lane-dense output rows
    """

    def kernel(x_ref, halo_ref, w_ref, b_ref, o_ref):
        # One contiguous (TM+1)-super-row working view; every tap below is a static,
        # unstrided slice of it (no stride-2 relayouts like the original formulation).
        x = jnp.concatenate([x_ref[0], halo_ref[0]], axis=0)  # (TM+1, SW, C4)

        def tap(dh, dw):
            t = 2 * dh + dw
            patch = x[dh:dh + TM, dw:dw + OW, :].reshape(TM * OW, C4)
            wk = w_ref[t * C4:(t + 1) * C4, :]
            return jnp.dot(patch, wk, preferred_element_type=jnp.float32)

        # Dual accumulators hide the MXU result-FIFO pop latency (v5e/v6e); bias is folded
        # into the first tap instead of a zero-init + extra VPU pass.
        acc0 = tap(0, 0) + b_ref[...]
        acc1 = tap(0, 1)
        acc0 = acc0 + tap(1, 0)
        acc1 = acc1 + tap(1, 1)
        o_ref[0] = (acc0 + acc1).astype(o_ref.dtype)

    return kernel


@functools.partial(jax.jit, static_argnames=("compute_dtype",))
def downsample2d(x_nchw, weight_oihw, bias, *, compute_dtype=jnp.float32):
    """Forward of Downsample2D(use_conv=True): Conv2d(C, OC, 3, stride=2, pad=1, bias).

    x_nchw:      (N, C, H, W)
    weight_oihw: (OC, C, 3, 3)   PyTorch Conv2d weight layout
    bias:        (OC,)
    returns:     (N, OC, ceil(H/2), ceil(W/2)), dtype of x.
    compute_dtype: jnp.float32 (default) or jnp.bfloat16 for the MXU-native path on
                   v6e/v7x (accumulation stays f32).
    """
    N, C, H, W = x_nchw.shape
    OC, C_in, KH, KW = weight_oihw.shape
    assert (KH, KW) == (3, 3) and C_in == C, "Downsample2D uses a 3x3, same-channel conv"

    out_dtype = x_nchw.dtype
    OH, OW = (H + 1) // 2, (W + 1) // 2
    SH, SW = OH + 1, OW + 1            # super-image (space-to-depth) spatial dims
    C4 = 4 * C                         # 4 stride phases x C channels
    OCp = _round_up(OC, 128)           # lane-dense output channels (unmasked vst)

    # ---- wrapper glue: layout transforms only (no compute) -------------------------------
    # NCHW -> NHWC, zero-pad (conv pad=1 plus parity padding so H/W become 2*(O?+1)),
    # then space-to-depth: x_s2d[n, r, s, ph*2C + pw*C + c] = x_pad[n, 2r+ph, 2s+pw, c].
    x = jnp.transpose(x_nchw, (0, 2, 3, 1))
    x = jnp.pad(x, ((0, 0), (1, 2 * OH + 1 - H), (1, 2 * OW + 1 - W), (0, 0)))
    x = x.reshape(N, SH, 2, SW, 2, C).transpose(0, 1, 3, 2, 4, 5).reshape(N, SH, SW, C4)
    x = x.astype(compute_dtype)

    # Weight: (OC,C,3,3) -> (3,3,C,OC) -> zero-pad taps to 4x4 and OC to OCp ->
    # super-conv weight (dh,dw,ph,pw,C,OCp) -> flat tap-major slab (4*C4, OCp).
    w = jnp.transpose(weight_oihw, (2, 3, 1, 0))
    w = jnp.pad(w, ((0, 1), (0, 1), (0, 0), (0, OCp - OC)))
    w = w.reshape(2, 2, 2, 2, C, OCp).transpose(0, 2, 1, 3, 4, 5)
    w = w.reshape(4 * C4, OCp).astype(compute_dtype)

    b = jnp.zeros((1, OCp), jnp.float32).at[0, :OC].set(bias.astype(jnp.float32))

    # ---- tiling / VMEM plan ---------------------------------------------------------------
    in_bytes = jnp.dtype(compute_dtype).itemsize
    out_bytes = jnp.dtype(out_dtype).itemsize
    TM = _pick_row_tile(OH, OW, SW, C4, OCp, in_bytes, out_bytes)
    n_tiles = OH // TM

    blk_bytes = 2 * ((TM + 1) * SW * C4 * in_bytes + TM * OW * OCp * out_bytes)
    fixed_bytes = 4 * C4 * OCp * in_bytes + OCp * 4
    vmem_limit = int(min(48 * 2**20,
                         max(16 * 2**20, 4 * blk_bytes + fixed_bytes + (2 << 20))))

    kernel = _make_downsample_kernel(TM, OW, SW, C4, OCp)

    out_flat = pl.pallas_call(
        kernel,
        out_shape=jax.ShapeDtypeStruct((N, OH * OW, OCp), out_dtype),
        grid=(N, n_tiles),
        in_specs=[
            # main super-rows of this row tile
            pl.BlockSpec((1, TM, SW, C4), lambda n, t: (n, t, 0, 0)),
            # 1-super-row halo: first row of the next tile (same array, second view)
            pl.BlockSpec((1, 1, SW, C4), lambda n, t: (n, (t + 1) * TM, 0, 0)),
            # weights / bias: constant block index -> stays resident, no re-DMA
            pl.BlockSpec((4 * C4, OCp), lambda n, t: (0, 0)),
            pl.BlockSpec((1, OCp), lambda n, t: (0, 0)),
        ],
        out_specs=pl.BlockSpec((1, TM * OW, OCp), lambda n, t: (n, t, 0)),
        compiler_params=pltpu.CompilerParams(
            dimension_semantics=("parallel", "parallel"),
            vmem_limit_bytes=vmem_limit,
        ),
    )(x, x, w, b)

    out = out_flat.reshape(N, OH, OW, OCp)[..., :OC]
    return jnp.transpose(out, (0, 3, 1, 2))  # back to NCHW


def _reference_conv(x_nchw, weight_oihw, bias, *, compute_dtype=jnp.float32):
    pad = weight_oihw.shape[2] // 2
    out = lax.conv_general_dilated(
        x_nchw.astype(compute_dtype),
        weight_oihw.astype(compute_dtype),
        window_strides=(2, 2),
        padding=((pad, pad), (pad, pad)),
        dimension_numbers=("NCHW", "OIHW", "NCHW"),
        preferred_element_type=jnp.float32,
    )
    return (out + bias.astype(jnp.float32).reshape(1, -1, 1, 1)).astype(x_nchw.dtype)


if __name__ == "__main__":
    # Small shapes consistent with Downsample2D(channels=4): NCHW input (2, 4, 16, 16).
    N, C, H, W = 2, 4, 16, 16
    OC, KH, KW = 4, 3, 3

    key = jax.random.PRNGKey(0)
    kx, kw_, kb = jax.random.split(key, 3)
    x = jax.random.normal(kx, (N, C, H, W), dtype=jnp.float32)

    # Deterministic parameter init (mirrors PyTorch Conv2d uniform bound 1/sqrt(fan_in)).
    fan_in = C * KH * KW
    bound = 1.0 / np.sqrt(fan_in)
    weight = jax.random.uniform(kw_, (OC, C, KH, KW), jnp.float32, -bound, bound)
    bias = jax.random.uniform(kb, (OC,), jnp.float32, -bound, bound)

    # f32 path
    out = jax.block_until_ready(downsample2d(x, weight, bias))
    ref = _reference_conv(x, weight, bias)
    assert out.shape == (N, OC, H // 2, W // 2), out.shape
    np.testing.assert_allclose(np.asarray(out), np.asarray(ref), atol=1e-5, rtol=1e-5)

    # bf16 compute path (MXU-native on v6e/v7x; halves input DMA bytes), f32 accumulation.
    out_bf16 = jax.block_until_ready(
        downsample2d(x, weight, bias, compute_dtype=jnp.bfloat16))
    ref_bf16 = _reference_conv(x, weight, bias, compute_dtype=jnp.bfloat16)
    np.testing.assert_allclose(np.asarray(out_bf16), np.asarray(ref_bf16),
                               atol=1e-4, rtol=1e-4)

    print("KERNEL_OK")
</pallas_src>

<mosaic_0001>
module attributes {stable_mosaic.version = 11 : i64} {
  func.func @kernel(%arg0: i32, %arg1: i32, %arg2: memref<1x4x9x16xf32, #tpu.memory_space<vmem>>, %arg3: memref<1x1x9x16xf32, #tpu.memory_space<vmem>>, %arg4: memref<64x128xf32, #tpu.memory_space<vmem>>, %arg5: memref<1x128xf32, #tpu.memory_space<vmem>>, %arg6: memref<1x32x128xf32, #tpu.memory_space<vmem>>) attributes {dimension_semantics = [#tpu.dimension_semantics<parallel>, #tpu.dimension_semantics<parallel>], iteration_bounds = array<i64: 2, 2>, scalar_prefetch = 0 : i64, scratch_operands = 0 : i64, tpu.core_type = #tpu.core_type<tc>, window_params = [{transform_indices = @transform_0, window_bounds = array<i64: 1, 4, 9, 16>}, {transform_indices = @transform_1, window_bounds = array<i64: 1, 1, 9, 16>}, {pipeline_mode = #tpu.pipeline_mode<synchronous>, transform_indices = @transform_2, window_bounds = array<i64: 64, 128>}, {pipeline_mode = #tpu.pipeline_mode<synchronous>, transform_indices = @transform_3, window_bounds = array<i64: 1, 128>}, {transform_indices = @transform_4, window_bounds = array<i64: 1, 32, 128>}]} {
    %c0 = arith.constant 0 : index
    %c0_0 = arith.constant 0 : index
    %c0_1 = arith.constant 0 : index
    %c0_2 = arith.constant 0 : index
    %0 = vector.load %arg2[%c0, %c0_0, %c0_1, %c0_2] : memref<1x4x9x16xf32, #tpu.memory_space<vmem>>, vector<1x4x9x16xf32>
    %1 = vector.shape_cast %0 : vector<1x4x9x16xf32> to vector<4x9x16xf32>
    %c0_3 = arith.constant 0 : index
    %c0_4 = arith.constant 0 : index
    %c0_5 = arith.constant 0 : index
    %c0_6 = arith.constant 0 : index
    %2 = vector.load %arg3[%c0_3, %c0_4, %c0_5, %c0_6] : memref<1x1x9x16xf32, #tpu.memory_space<vmem>>, vector<1x1x9x16xf32>
    %3 = vector.shape_cast %2 : vector<1x1x9x16xf32> to vector<1x9x16xf32>
    %4 = tpu.concatenate %1, %3 in 0 : vector<4x9x16xf32>, vector<1x9x16xf32> -> vector<5x9x16xf32>
    %5 = vector.extract_strided_slice %4 {offsets = [0, 0, 0], sizes = [4, 8, 16], strides = [1, 1, 1]} : vector<5x9x16xf32> to vector<4x8x16xf32>
    %6 = vector.shape_cast %5 : vector<4x8x16xf32> to vector<32x16xf32>
    %c0_7 = arith.constant 0 : index
    %c0_8 = arith.constant 0 : index
    %7 = vector.load %arg4[%c0_7, %c0_8] : memref<64x128xf32, #tpu.memory_space<vmem>>, vector<16x128xf32>
    %cst = arith.constant dense<0.000000e+00> : vector<32x128xf32>
    %8 = tpu.matmul %6, %7, %cst {dimension_numbers = #tpu.dot_dimension_numbers<[1], [0], [0], [1], [0, 0, 1, 1], [], []>} : vector<32x16xf32>, vector<16x128xf32>, vector<32x128xf32> -> vector<32x128xf32>
    %c0_9 = arith.constant 0 : index
    %c0_10 = arith.constant 0 : index
    %9 = vector.load %arg5[%c0_9, %c0_10] : memref<1x128xf32, #tpu.memory_space<vmem>>, vector<1x128xf32>
    %10 = vector.broadcast %9 : vector<1x128xf32> to vector<32x128xf32>
    %11 = arith.addf %8, %10 : vector<32x128xf32>
    %12 = vector.extract_strided_slice %4 {offsets = [0, 1, 0], sizes = [4, 8, 16], strides = [1, 1, 1]} : vector<5x9x16xf32> to vector<4x8x16xf32>
    %13 = vector.shape_cast %12 : vector<4x8x16xf32> to vector<32x16xf32>
    %c16 = arith.constant 16 : index
    %c0_11 = arith.constant 0 : index
    %14 = vector.load %arg4[%c16, %c0_11] : memref<64x128xf32, #tpu.memory_space<vmem>>, vector<16x128xf32>
    %cst_12 = arith.constant dense<0.000000e+00> : vector<32x128xf32>
    %15 = tpu.matmul %13, %14, %cst_12 {dimension_numbers = #tpu.dot_dimension_numbers<[1], [0], [0], [1], [0, 0, 1, 1], [], []>} : vector<32x16xf32>, vector<16x128xf32>, vector<32x128xf32> -> vector<32x128xf32>
    %16 = vector.extract_strided_slice %4 {offsets = [1, 0, 0], sizes = [4, 8, 16], strides = [1, 1, 1]} : vector<5x9x16xf32> to vector<4x8x16xf32>
    %17 = vector.shape_cast %16 : vector<4x8x16xf32> to vector<32x16xf32>
    %c32 = arith.constant 32 : index
    %c0_13 = arith.constant 0 : index
    %18 = vector.load %arg4[%c32, %c0_13] : memref<64x128xf32, #tpu.memory_space<vmem>>, vector<16x128xf32>
    %cst_14 = arith.constant dense<0.000000e+00> : vector<32x128xf32>
    %19 = tpu.matmul %17, %18, %cst_14 {dimension_numbers = #tpu.dot_dimension_numbers<[1], [0], [0], [1], [0, 0, 1, 1], [], []>} : vector<32x16xf32>, vector<16x128xf32>, vector<32x128xf32> -> vector<32x128xf32>
    %20 = arith.addf %11, %19 : vector<32x128xf32>
    %21 = vector.extract_strided_slice %4 {offsets = [1, 1, 0], sizes = [4, 8, 16], strides = [1, 1, 1]} : vector<5x9x16xf32> to vector<4x8x16xf32>
    %22 = vector.shape_cast %21 : vector<4x8x16xf32> to vector<32x16xf32>
    %c48 = arith.constant 48 : index
    %c0_15 = arith.constant 0 : index
    %23 = vector.load %arg4[%c48, %c0_15] : memref<64x128xf32, #tpu.memory_space<vmem>>, vector<16x128xf32>
    %cst_16 = arith.constant dense<0.000000e+00> : vector<32x128xf32>
    %24 = tpu.matmul %22, %23, %cst_16 {dimension_numbers = #tpu.dot_dimension_numbers<[1], [0], [0], [1], [0, 0, 1, 1], [], []>} : vector<32x16xf32>, vector<16x128xf32>, vector<32x128xf32> -> vector<32x128xf32>
    %25 = arith.addf %15, %24 : vector<32x128xf32>
    %26 = arith.addf %20, %25 : vector<32x128xf32>
    %c0_17 = arith.constant 0 : index
    %c0_18 = arith.constant 0 : index
    %c0_19 = arith.constant 0 : index
    %27 = vector.load %arg6[%c0_17, %c0_18, %c0_19] : memref<1x32x128xf32, #tpu.memory_space<vmem>>, vector<1x32x128xf32>
    %28 = vector.shape_cast %27 : vector<1x32x128xf32> to vector<32x128xf32>
    %29 = vector.shape_cast %26 : vector<32x128xf32> to vector<1x32x128xf32>
    tpu.vector_store %arg6[%c0_17, %c0_18, %c0_19], %29 {strides = array<i32>} : memref<1x32x128xf32, #tpu.memory_space<vmem>>, vector<1x32x128xf32>,
    return
  }
  func.func @transform_0(%arg0: i32, %arg1: i32) -> (i32, i32, i32, i32) {
    %c0_i32 = arith.constant 0 : i32
    %c0_i32_0 = arith.constant 0 : i32
    %c0_i32_1 = arith.constant 0 : i32
    return %arg0, %arg1, %c0_i32, %c0_i32_0 : i32, i32, i32, i32
  }
  func.func @transform_1(%arg0: i32, %arg1: i32) -> (i32, i32, i32, i32) {
    %c1_i32 = arith.constant 1 : i32
    %0 = arith.addi %arg1, %c1_i32 : i32
    %c4_i32 = arith.constant 4 : i32
    %1 = arith.muli %0, %c4_i32 : i32
    %c0_i32 = arith.constant 0 : i32
    %c0_i32_0 = arith.constant 0 : i32
    %c0_i32_1 = arith.constant 0 : i32
    return %arg0, %1, %c0_i32, %c0_i32_0 : i32, i32, i32, i32
  }
  func.func @transform_2(%arg0: i32, %arg1: i32) -> (i32, i32) {
    %c0_i32 = arith.constant 0 : i32
    %c0_i32_0 = arith.constant 0 : i32
    %c0_i32_1 = arith.constant 0 : i32
    return %c0_i32, %c0_i32_0 : i32, i32
  }
  func.func @transform_3(%arg0: i32, %arg1: i32) -> (i32, i32) {
    %c0_i32 = arith.constant 0 : i32
    %c0_i32_0 = arith.constant 0 : i32
    %c0_i32_1 = arith.constant 0 : i32
    return %c0_i32, %c0_i32_0 : i32, i32
  }
  func.func @transform_4(%arg0: i32, %arg1: i32) -> (i32, i32, i32) {
    %c0_i32 = arith.constant 0 : i32
    %c0_i32_0 = arith.constant 0 : i32
    return %arg0, %arg1, %c0_i32 : i32, i32, i32
  }
}

</mosaic_0001>

<llo_original>
// kernel: downsample2d.1
$region0: #{downsample2d.1}
  #allocation0 [shape = 'u32[]', space=smem, size = 0x4, offset = 0x4, fixed_abs, tag = 'smem constant byte address 0x4 - core index']
  #allocation1 [shape = 'u32[144,128]{1,0:T(1,128)}', space=vmem, size = 0x12000, scoped, tag = 'internal scratch']
  %s0 = inlined_call_operand.vmem [shape: f32[2,9,9,16], index: 0, kind: input, shape index: {}, may-alias: {0,1}]
  %s1 = inlined_call_operand.vmem [shape: f32[2,9,9,16], index: 1, kind: input, shape index: {}, may-alias: {0,1}]
  %s2 = inlined_call_operand.vmem [shape: f32[64,128], index: 2, kind: input, shape index: {}]
  %s3 = inlined_call_operand.vmem [shape: f32[1,128], index: 3, kind: input, shape index: {}]
  %s4 = inlined_call_operand.vmem [shape: f32[2,64,128], index: 4, kind: output, shape index: {}]
  %s5 = sld [smem:[#allocation0]]
  $region49: #{downsample2d.1} parent=0
    _
  %s7 = ssub.s32 1, %s5
  %s8 = scalar_select 0, %s7, %s5
  loop: start=0, step=1, limit=6
  $region2: #{downsample2d.1} parent=0 // loop_pre_header
    _
  $region3: #{downsample2d.1} parent=0 // loop_header
    %s10 = sphi 0, %s14
    %p11 = scmp.ge.s32.totalorder %s10, 6
    %s17 = sphi 0, %s29
    %s18 = sphi 0, %s25
    %s19 = sphi 0, %s17
    %s20 = sphi 0, %s18
    %s21 = sphi 0, %s19
    %s22 = sphi 0, %s20
    %s34 = sphi 0, %s36
    %s37 = sphi 0, %s34
    %s38 = sphi 0, %s37
    %s54 = sphi 0, %s38
    %s66 = sphi 0, %s68
    %s69 = sphi 0, %s66
    %s70 = sphi 0, %s69
    %s86 = sphi 0, %s70
    %s90 = sphi 0, %s90
    %s92 = sphi 0, %s90
    %s93 = sphi 0, %s92
    %s107 = sphi 0, %s93
    %s111 = sphi 0, %s111
    %s113 = sphi 0, %s111
    %s114 = sphi 0, %s113
    %s128 = sphi 0, %s114
    %s136 = sphi 0, %s138
    %s139 = sphi 0, %s136
    %s140 = sphi 0, %s139
    %s156 = sphi 0, %s140
  $region4: #{downsample2d.1} parent=0 // loop_header_branch
    %13 = sbr.rel (%p11) target = $region8
  $region5: #{downsample2d.1} parent=0 // loop_body
    %s15 = ssub.s32 %s10, 1
    %s16 = ssub.s32 %s10, 2
    %s23 = sadd.s32 1, %s18
    %p24 = scmp.ge.s32.totalorder %s23, 2
    %s25 = scalar_select %p24, 0, %s23
    %s26 = sadd.s32 1, %s17
    %s27 = scalar_select %p24, %s26, %s17
    %p28 = scmp.ge.s32.totalorder %s27, 2
    %s29 = scalar_select %p28, 0, %s27
    %s30 = ssub.s32 %s17, %s29
    %s31 = ssub.s32 %s18, %s25
    %s32 = sor.u32 %s30, %s31
    %p33 = scmp.eq.s32.totalorder %s32, 0
    %s35 = sadd.s32 %s34, 1
    %s36 = scalar_select %p33, %s34, %s35
    %p39 = pneg %p33
    %p40 = scmp.eq.s32.totalorder %s10, 3
    %p41 = por %p39, %p40
    %p42 = scmp.ne.s32.totalorder %s34, %s37
    %p43 = scmp.eq.s32.totalorder %s10, 0
    %p44 = por %p42, %p43
    %p45 = scmp.ne.s32.totalorder %s34, %s37
    %p46 = scmp.eq.s32.totalorder %s15, 3
    %p47 = por %p45, %p46
    %p48 = scmp.ne.s32.totalorder %s37, %s38
    %p49 = scmp.eq.s32.totalorder %s15, 0
    %p50 = por %p48, %p49
    %p51 = scmp.ne.s32.totalorder %s37, %s38
    %p52 = scmp.eq.s32.totalorder %s16, 3
    %p53 = por %p51, %p52
    %p55 = scmp.ne.s32.totalorder %s38, %s54
    %p56 = scmp.eq.s32.totalorder %s16, 0
    %p57 = por %p55, %p56
    %s58 = sadd.s32 %s18, 1
    %s59 = smul.u32 %s58, 4
    %s60 = sadd.s32 %s25, 1
    %s61 = smul.u32 %s60, 4
    %s62 = ssub.s32 %s17, %s29
    %s63 = ssub.s32 %s59, %s61
    %s64 = sor.u32 %s62, %s63
    %p65 = scmp.eq.s32.totalorder %s64, 0
    %s67 = sadd.s32 %s66, 1
    %s68 = scalar_select %p65, %s66, %s67
    %p71 = pneg %p65
    %p72 = scmp.eq.s32.totalorder %s10, 3
    %p73 = por %p71, %p72
    %p74 = scmp.ne.s32.totalorder %s66, %s69
    %p75 = scmp.eq.s32.totalorder %s10, 0
    %p76 = por %p74, %p75
    %p77 = scmp.ne.s32.totalorder %s66, %s69
    %p78 = scmp.eq.s32.totalorder %s15, 3
    %p79 = por %p77, %p78
    %p80 = scmp.ne.s32.totalorder %s69, %s70
    %p81 = scmp.eq.s32.totalorder %s15, 0
    %p82 = por %p80, %p81
    %p83 = scmp.ne.s32.totalorder %s69, %s70
    %p84 = scmp.eq.s32.totalorder %s16, 3
    %p85 = por %p83, %p84
    %p87 = scmp.ne.s32.totalorder %s70, %s86
    %p88 = scmp.eq.s32.totalorder %s16, 0
    %p89 = por %p87, %p88
    %s91 = sadd.s32 %s90, 1
    %p94 = scmp.eq.s32.totalorder %s10, 3
    %p95 = scmp.ne.s32.totalorder %s90, %s92
    %p96 = scmp.eq.s32.totalorder %s10, 0
    %p97 = por %p95, %p96
    %p98 = scmp.ne.s32.totalorder %s90, %s92
    %p99 = scmp.eq.s32.totalorder %s15, 3
    %p100 = por %p98, %p99
    %p101 = scmp.ne.s32.totalorder %s92, %s93
    %p102 = scmp.eq.s32.totalorder %s15, 0
    %p103 = por %p101, %p102
    %p104 = scmp.ne.s32.totalorder %s92, %s93
    %p105 = scmp.eq.s32.totalorder %s16, 3
    %p106 = por %p104, %p105
    %p108 = scmp.ne.s32.totalorder %s93, %s107
    %p109 = scmp.eq.s32.totalorder %s16, 0
    %p110 = por %p108, %p109
    %s112 = sadd.s32 %s111, 1
    %p115 = scmp.eq.s32.totalorder %s10, 3
    %p116 = scmp.ne.s32.totalorder %s111, %s113
    %p117 = scmp.eq.s32.totalorder %s10, 0
    %p118 = por %p116, %p117
    %p119 = scmp.ne.s32.totalorder %s111, %s113
    %p120 = scmp.eq.s32.totalorder %s15, 3
    %p121 = por %p119, %p120
    %p122 = scmp.ne.s32.totalorder %s113, %s114
    %p123 = scmp.eq.s32.totalorder %s15, 0
    %p124 = por %p122, %p123
    %p125 = scmp.ne.s32.totalorder %s113, %s114
    %p126 = scmp.eq.s32.totalorder %s16, 3
    %p127 = por %p125, %p126
    %p129 = scmp.ne.s32.totalorder %s114, %s128
    %p130 = scmp.eq.s32.totalorder %s16, 0
    %p131 = por %p129, %p130
    %s132 = ssub.s32 %s17, %s29
    %s133 = ssub.s32 %s18, %s25
    %s134 = sor.u32 %s132, %s133
    %p135 = scmp.eq.s32.totalorder %s134, 0
    %s137 = sadd.s32 %s136, 1
    %s138 = scalar_select %p135, %s136, %s137
    %p141 = pneg %p135
    %p142 = scmp.eq.s32.totalorder %s10, 3
    %p143 = por %p141, %p142
    %p144 = scmp.ne.s32.totalorder %s136, %s139
    %p145 = scmp.eq.s32.totalorder %s10, 0
    %p146 = por %p144, %p145
    %p147 = scmp.ne.s32.totalorder %s136, %s139
    %p148 = scmp.eq.s32.totalorder %s15, 3
    %p149 = por %p147, %p148
    %p150 = scmp.ne.s32.totalorder %s139, %s140
    %p151 = scmp.eq.s32.totalorder %s15, 0
    %p152 = por %p150, %p151
    %p153 = scmp.ne.s32.totalorder %s139, %s140
    %p154 = scmp.eq.s32.totalorder %s16, 3
    %p155 = por %p153, %p154
    %p157 = scmp.ne.s32.totalorder %s140, %s156
    %p158 = scmp.eq.s32.totalorder %s16, 0
    %p159 = por %p157, %p158
    %p160 = scmp.le.s32.totalorder 1, %s10
    %p161 = scmp.lt.s32.totalorder %s10, 5
    %p162 = pnand %p160, %p161
    %p163 = pneg %p162
    // Predicated region
    $region9: #{downsample2d.1} parent=5 // pred_check
      _
    $region10: #{downsample2d.1} parent=5 // pred_check_branch
      %165 = sbr.rel (%p162) target = $region12
    $region11: #{downsample2d.1} parent=5 // pred_region
      %s166 = ssub.s32 %s10, 1
      // Predicated region
      $region13: #{downsample2d.1} parent=11 // pred_check
        %p167 = pneg %p103
      $region14: #{downsample2d.1} parent=11 // pred_check_branch
        %169 = sbr.rel (%p167) target = $region16
      $region15: #{downsample2d.1} parent=11 // pred_region
        _
      $region16: #{downsample2d.1} parent=11 // pred_fallthru
        _
      // Predicated region
      $region17: #{downsample2d.1} parent=11 // pred_check
        %p170 = pneg %p124
      $region18: #{downsample2d.1} parent=11 // pred_check_branch
        %172 = sbr.rel (%p170) target = $region20
      $region19: #{downsample2d.1} parent=11 // pred_region
        _
      $region20: #{downsample2d.1} parent=11 // pred_fallthru
        _
    $region12: #{downsample2d.1} parent=5 // pred_fallthru
      _
    %p173 = scmp.lt.s32.totalorder %s10, 4
    // Predicated region
    $region21: #{downsample2d.1} parent=5 // pred_check
      %p174 = pneg %p173
    $region22: #{downsample2d.1} parent=5 // pred_check_branch
      %176 = sbr.rel (%p174) target = $region24
    $region23: #{downsample2d.1} parent=5 // pred_region
      // Predicated region
      $region25: #{downsample2d.1} parent=23 // pred_check
        %p177 = pneg %p44
      $region26: #{downsample2d.1} parent=23 // pred_check_branch
        %179 = sbr.rel (%p177) target = $region28
      $region27: #{downsample2d.1} parent=23 // pred_region
        %s180 = smul.u32 4, %s18
        %s181 = ssub.s32 9, %s180
        %p182 = scmp.lt.s32.totalorder %s181, 4
        %s183 = scalar_select %p182, %s181, 4
        %s184 = smul.u32 128, %s183
        %s185 = smul.u32 %s184, 2
        %p186 = scmp.lt.s32.totalorder %s17, 1
        %s187 = scalar_select %p186, %s17, 1
        %p188 = scmp.lt.s32.totalorder %s180, 8
        %s189 = scalar_select %p188, %s180, 8
        %s190 = smul.addr %s189, 2
        %s191 = smul.addr %s187, 18
        %s192 = sadd.s32 %s190, %s191
        %s193 = smul.addr %s192, 8
        %s194 = scalar_lea.vmem %s0, %s193
        %s195 = smul.u32 4, %s18
        %s196 = ssub.s32 9, %s195
        %p197 = scmp.lt.s32.totalorder %s196, 4
        %s198 = scalar_select %p197, %s196, 4
        %s199 = smul.u32 128, %s198
        %s200 = smul.u32 %s199, 2
      $region28: #{downsample2d.1} parent=23 // pred_fallthru
        _
      // Predicated region
      $region29: #{downsample2d.1} parent=23 // pred_check
        %p201 = pneg %p76
      $region30: #{downsample2d.1} parent=23 // pred_check_branch
        %203 = sbr.rel (%p201) target = $region32
      $region31: #{downsample2d.1} parent=23 // pred_region
        %s204 = sadd.s32 %s18, 1
        %s205 = smul.u32 %s204, 4
        %p206 = scmp.lt.s32.totalorder %s17, 1
        %s207 = scalar_select %p206, %s17, 1
        %p208 = scmp.lt.s32.totalorder %s205, 8
        %s209 = scalar_select %p208, %s205, 8
        %s210 = smul.addr %s209, 2
        %s211 = smul.addr %s207, 18
        %s212 = sadd.s32 %s210, %s211
        %s213 = smul.addr %s212, 8
        %s214 = scalar_lea.vmem %s1, %s213
        %s215 = sadd.s32 %s18, 1
        %s216 = smul.u32 %s215, 4
      $region32: #{downsample2d.1} parent=23 // pred_fallthru
        _
    $region24: #{downsample2d.1} parent=5 // pred_fallthru
      _
    %p217 = scmp.le.s32.totalorder 1, %s10
    %p218 = scmp.lt.s32.totalorder %s10, 5
    %p219 = pnand %p217, %p218
    %p220 = pneg %p219
    // Predicated region
    $region33: #{downsample2d.1} parent=5 // pred_check
      _
    $region34: #{downsample2d.1} parent=5 // pred_check_branch
      %222 = sbr.rel (%p219) target = $region36
    $region35: #{downsample2d.1} parent=5 // pred_region
      %s223 = ssub.s32 %s10, 1
      %s224 = smul.u32 4, %s20
      %s225 = ssub.s32 9, %s224
      %p226 = scmp.lt.s32.totalorder %s225, 4
      %s227 = scalar_select %p226, %s225, 4
      %s228 = smul.u32 128, %s227
      %s229 = smul.u32 %s228, 2
      %p230 = scmp.lt.s32.totalorder %s19, 1
      %s231 = scalar_select %p230, %s19, 1
      %p232 = scmp.lt.s32.totalorder %s224, 8
      %s233 = scalar_select %p232, %s224, 8
      %s234 = smul.addr %s233, 2
      %s235 = smul.addr %s231, 18
      %s236 = sadd.s32 %s234, %s235
      %s237 = smul.addr %s236, 8
      %s238 = scalar_lea.vmem %s0, %s237
      %p239 = pneg %p50
      %p240 = pneg %p47
      %s241 = sadd.s32 %s20, 1
      %s242 = smul.u32 %s241, 4
      %p243 = scmp.lt.s32.totalorder %s19, 1
      %s244 = scalar_select %p243, %s19, 1
      %p245 = scmp.lt.s32.totalorder %s242, 8
      %s246 = scalar_select %p245, %s242, 8
      %s247 = smul.addr %s246, 2
      %s248 = smul.addr %s244, 18
      %s249 = sadd.s32 %s247, %s248
      %s250 = smul.addr %s249, 8
      %s251 = scalar_lea.vmem %s1, %s250
      %p252 = pneg %p82
      %p253 = pneg %p79
      %p254 = pneg %p103
      %p255 = pneg %p100
      %p256 = pneg %p124
      %p257 = pneg %p121
      %p258 = pneg %p152
      %p259 = pneg %p149
      %s260 = smul.u32 4, %s20
      %p261 = scmp.lt.s32.totalorder %s19, 1
      %s262 = scalar_select %p261, %s19, 1
      %p263 = scmp.lt.s32.totalorder %s260, 7
      %s264 = scalar_select %p263, %s260, 7
      %s265 = smul.addr %s262, 8
      %s266 = sadd.s32 %s264, %s265
      %s267 = smul.addr %s266, 8
      %s268 = scalar_lea.vmem %s4, %s267
      %s269 = smul.u32 4, %s20
      %s270 = ssub.s32 9, %s269
      %p271 = scmp.lt.s32.totalorder %s270, 4
      %s272 = scalar_select %p271, %s270, 4
      %s273 = smul.u32 128, %s272
      %s274 = smul.u32 %s273, 2
      %p275 = scmp.lt.s32.totalorder %s19, 1
      %s276 = scalar_select %p275, %s19, 1
      %p277 = scmp.lt.s32.totalorder %s269, 8
      %s278 = scalar_select %p277, %s269, 8
      %s279 = smul.addr %s278, 2
      %s280 = smul.addr %s276, 18
      %s281 = sadd.s32 %s279, %s280
      %s282 = smul.addr %s281, 8
      %s283 = scalar_lea.vmem %s0, %s282
      %s284 = smul.u32 4, %s20
      %s285 = ssub.s32 9, %s284
      %p286 = scmp.lt.s32.totalorder %s285, 4
      %s287 = scalar_select %p286, %s285, 4
      %s288 = smul.u32 128, %s287
      %s289 = smul.u32 %s288, 2
      %s290 = sadd.s32 %s20, 1
      %s291 = smul.u32 %s290, 4
      %p292 = scmp.lt.s32.totalorder %s19, 1
      %s293 = scalar_select %p292, %s19, 1
      %p294 = scmp.lt.s32.totalorder %s291, 8
      %s295 = scalar_select %p294, %s291, 8
      %s296 = smul.addr %s295, 2
      %s297 = smul.addr %s293, 18
      %s298 = sadd.s32 %s296, %s297
      %s299 = smul.addr %s298, 8
      %s300 = scalar_lea.vmem %s1, %s299
      %s301 = sadd.s32 %s20, 1
      %s302 = smul.u32 %s301, 4
      %s303 = smul.u32 4, %s20
      %p304 = scmp.lt.s32.totalorder %s19, 1
      %s305 = scalar_select %p304, %s19, 1
      %p306 = scmp.lt.s32.totalorder %s303, 7
      %s307 = scalar_select %p306, %s303, 7
      %s308 = smul.addr %s305, 8
      %s309 = sadd.s32 %s307, %s308
      %s310 = smul.addr %s309, 8
      %s311 = scalar_lea.vmem %s4, %s310
      %s312 = smul.u32 4, %s20
      %v313 = vld [vmem:[%s283] sm:$0xff]
      %v314 = vld [vmem:[%s283 + $0x8] sm:$0x1]
      %v315 = vld [vmem:[%s283 + $0x10] sm:$0xff]
      %v316 = vld [vmem:[%s283 + $0x18] sm:$0x1]
      %v317 = vld [vmem:[%s283 + $0x20] sm:$0xff]
      %v318 = vld [vmem:[%s283 + $0x28] sm:$0x1]
      %v319 = vld [vmem:[%s283 + $0x30] sm:$0xff]
      %v320 = vld [vmem:[%s283 + $0x38] sm:$0x1]
      %v321 = vld [vmem:[%s300] sm:$0xff]
      %v322 = vld [vmem:[%s300 + $0x8] sm:$0x1]
      %v323 = vld [vmem:[%s2] sm:$0xff]
      %v324 = vld [vmem:[%s2 + $0x8] sm:$0xff]
      %v325 = vld [vmem:[%s3] sm:$0x1]
      %v327 = vlaneseq
      %v328 = vshrl.u32 %v327, 7
      %v329 = vsub.s32 0, %v328
      %v330 = vrot.slane %v325, %v329
      %vm332 = vcmask 130048
      %v334 = vsel %vm332, %v313, 0
      %v337 = vsel %vm332, %v315, 0
      %v340 = vsel %vm332, %v317, 0
      %v343 = vsel %vm332, %v319, 0
      %345 = vmatprep.subr.mxu0 0.0
      %346 = vmatpush1.msra.mxu0 %v323
      %347 = vmatprep.subr.mxu0 0.0
      %348 = vmatpush1.msra.mxu0 %v324
      %349 = vmatprep.subr.mxu0 0.0
      %350 = vmatpush1.msra.mxu0 0.0
      %351 = vmatprep.subr.mxu0 0.0
      %352 = vmatpush1.msra.mxu0 0.0
      %353 = vmatprep.subr.mxu0 0.0
      %354 = vmatpush1.msra.mxu0 0.0
      %355 = vmatprep.subr.mxu0 0.0
      %356 = vmatpush1.msra.mxu0 0.0
      %357 = vmatprep.subr.mxu0 0.0
      %358 = vmatpush1.msra.mxu0 0.0
      %359 = vmatprep.subr.mxu0 0.0
      %360 = vmatpush1.msra.mxu0 0.0
      %361 = vmatprep.subr.mxu0 0.0
      %362 = vmatpush1.msra.mxu0 0.0
      %363 = vmatprep.subr.mxu0 0.0
      %364 = vmatpush1.msra.mxu0 0.0
      %365 = vmatprep.subr.mxu0 0.0
      %366 = vmatpush1.msra.mxu0 0.0
      %367 = vmatprep.subr.mxu0 0.0
      %368 = vmatpush1.msra.mxu0 0.0
      %369 = vmatprep.subr.mxu0 0.0
      %370 = vmatpush1.msra.mxu0 0.0
      %371 = vmatprep.subr.mxu0 0.0
      %372 = vmatpush1.msra.mxu0 0.0
      %373 = vmatprep.subr.mxu0 0.0
      %374 = vmatpush1.msra.mxu0 0.0
      %375 = vmatprep.subr.mxu0 0.0
      %376 = vmatpush1.msra.mxu0 0.0
      %377 = vmatprep.subr.mxu0 0.0
      %378 = vmatpush1.msra.mxu0 0.0
      %379 = vmatprep.subr.mxu0 0.0
      %380 = vmatpush1.msra.mxu0 0.0
      %381 = vmatprep.subr.mxu0 0.0
      %382 = vmatpush1.msra.mxu0 0.0
      %383 = vmatprep.subr.mxu0 0.0
      %384 = vmatpush1.msra.mxu0 0.0
      %385 = vmatprep.subr.mxu0 0.0
      %386 = vmatpush1.msra.mxu0 0.0
      %387 = vmatprep.subr.mxu0 0.0
      %388 = vmatpush1.msra.mxu0 0.0
      %389 = vmatprep.subr.mxu0 0.0
      %390 = vmatpush1.msra.mxu0 0.0
      %391 = vmatprep.subr.mxu0 0.0
      %392 = vmatpush1.msra.mxu0 0.0
      %393 = vmatprep.subr.mxu0 0.0
      %394 = vmatpush1.msra.mxu0 0.0
      %395 = vmatprep.subr.mxu0 0.0
      %396 = vmatpush1.msra.mxu0 0.0
      %397 = vmatprep.subr.mxu0 0.0
      %398 = vmatpush1.msra.mxu0 0.0
      %399 = vmatprep.subr.mxu0 0.0
      %400 = vmatpush1.msra.mxu0 0.0
      %401 = vmatprep.subr.mxu0 0.0
      %402 = vmatpush1.msra.mxu0 0.0
      %403 = vmatprep.subr.mxu0 0.0
      %404 = vmatpush1.msra.mxu0 0.0
      %405 = vmatprep.subr.mxu0 0.0
      %406 = vmatpush1.msra.mxu0 0.0
      %407 = vmatprep.subr.mxu0 0.0
      %408 = vmatpush1.msra.mxu0 0.0
      %409 = vmatprep.mubr.f32.mxu0 0.0
      %410 = vmatmul.mubr.f32.gmra.mrb[0].mxu0 %v334
      %v411 = vpop.f32.mrb[0].mxu0
      %v412 = vadd.f32 %v330, %v411
      %v413 = vpop.f32.mrb[0].mxu0
      %414 = vmatprep.mubr.f32.mxu0 0.0
      %415 = vmatmul.mubr.f32.gmra.mrb[0].mxu0 %v337
      %v416 = vpop.f32.mrb[0].mxu0
      %v417 = vadd.f32 %v330, %v416
      %v418 = vpop.f32.mrb[0].mxu0
      %419 = vmatprep.mubr.f32.mxu0 0.0
      %420 = vmatmul.mubr.f32.gmra.mrb[0].mxu0 %v340
      %v421 = vpop.f32.mrb[0].mxu0
      %v422 = vadd.f32 %v330, %v421
      %v423 = vpop.f32.mrb[0].mxu0
      %424 = vmatprep.mubr.f32.mxu0 0.0
      %425 = vmatmul.mubr.f32.gmra.mrb[0].mxu0 %v343
      %v426 = vpop.f32.mrb[0].mxu0
      %v427 = vadd.f32 %v330, %v426
      %v428 = vpop.f32.mrb[0].mxu0
      %429 = vdwg.mxu0
      %vm434 = vcmask 1046528
      %v435 = vrot.slane %v313, 1
      %v436 = vrot.slane %v314, 1
      %v437 = vsel %vm434, %v435, %v436
      %v438 = vrot.slane %v315, 1
      %v439 = vrot.slane %v316, 1
      %v440 = vsel %vm434, %v438, %v439
      %v441 = vrot.slane %v317, 1
      %v442 = vrot.slane %v318, 1
      %v443 = vsel %vm434, %v441, %v442
      %v444 = vrot.slane %v319, 1
      %v445 = vrot.slane %v320, 1
      %v446 = vsel %vm434, %v444, %v445
      %v447 = vld [vmem:[%s2 + $0x10] sm:$0xff]
      %v448 = vld [vmem:[%s2 + $0x18] sm:$0xff]
      %v449 = vld [vmem:[%s2 + $0x20] sm:$0xff]
      %v450 = vld [vmem:[%s2 + $0x28] sm:$0xff]
      %v452 = vsel %vm332, %v321, 0
      %454 = vmatprep.subr.mxu0 0.0
      %455 = vmatpush1.msra.mxu0 %v449
      %456 = vmatprep.subr.mxu0 0.0
      %457 = vmatpush1.msra.mxu0 %v450
      %458 = vmatprep.subr.mxu0 0.0
      %459 = vmatpush1.msra.mxu0 0.0
      %460 = vmatprep.subr.mxu0 0.0
      %461 = vmatpush1.msra.mxu0 0.0
      %462 = vmatprep.subr.mxu0 0.0
      %463 = vmatpush1.msra.mxu0 0.0
      %464 = vmatprep.subr.mxu0 0.0
      %465 = vmatpush1.msra.mxu0 0.0
      %466 = vmatprep.subr.mxu0 0.0
      %467 = vmatpush1.msra.mxu0 0.0
      %468 = vmatprep.subr.mxu0 0.0
      %469 = vmatpush1.msra.mxu0 0.0
      %470 = vmatprep.subr.mxu0 0.0
      %471 = vmatpush1.msra.mxu0 0.0
      %472 = vmatprep.subr.mxu0 0.0
      %473 = vmatpush1.msra.mxu0 0.0
      %474 = vmatprep.subr.mxu0 0.0
      %475 = vmatpush1.msra.mxu0 0.0
      %476 = vmatprep.subr.mxu0 0.0
      %477 = vmatpush1.msra.mxu0 0.0
      %478 = vmatprep.subr.mxu0 0.0
      %479 = vmatpush1.msra.mxu0 0.0
      %480 = vmatprep.subr.mxu0 0.0
      %481 = vmatpush1.msra.mxu0 0.0
      %482 = vmatprep.subr.mxu0 0.0
      %483 = vmatpush1.msra.mxu0 0.0
      %484 = vmatprep.subr.mxu0 0.0
      %485 = vmatpush1.msra.mxu0 0.0
      %486 = vmatprep.subr.mxu0 0.0
      %487 = vmatpush1.msra.mxu0 0.0
      %488 = vmatprep.subr.mxu0 0.0
      %489 = vmatpush1.msra.mxu0 0.0
      %490 = vmatprep.subr.mxu0 0.0
      %491 = vmatpush1.msra.mxu0 0.0
      %492 = vmatprep.subr.mxu0 0.0
      %493 = vmatpush1.msra.mxu0 0.0
      %494 = vmatprep.subr.mxu0 0.0
      %495 = vmatpush1.msra.mxu0 0.0
      %496 = vmatprep.subr.mxu0 0.0
      %497 = vmatpush1.msra.mxu0 0.0
      %498 = vmatprep.subr.mxu0 0.0
      %499 = vmatpush1.msra.mxu0 0.0
      %500 = vmatprep.subr.mxu0 0.0
      %501 = vmatpush1.msra.mxu0 0.0
      %502 = vmatprep.subr.mxu0 0.0
      %503 = vmatpush1.msra.mxu0 0.0
      %504 = vmatprep.subr.mxu0 0.0
      %505 = vmatpush1.msra.mxu0 0.0
      %506 = vmatprep.subr.mxu0 0.0
      %507 = vmatpush1.msra.mxu0 0.0
      %508 = vmatprep.subr.mxu0 0.0
      %509 = vmatpush1.msra.mxu0 0.0
      %510 = vmatprep.subr.mxu0 0.0
      %511 = vmatpush1.msra.mxu0 0.0
      %512 = vmatprep.subr.mxu0 0.0
      %513 = vmatpush1.msra.mxu0 0.0
      %514 = vmatprep.subr.mxu0 0.0
      %515 = vmatpush1.msra.mxu0 0.0
      %516 = vmatprep.subr.mxu0 0.0
      %517 = vmatpush1.msra.mxu0 0.0
      %518 = vmatprep.mubr.f32.mxu0 0.0
      %519 = vmatmul.mubr.f32.gmra.mrb[0].mxu0 %v337
      %v520 = vpop.f32.mrb[0].mxu0
      %v521 = vadd.f32 0.0, %v520
      %v522 = vpop.f32.mrb[0].mxu0
      %523 = vmatprep.mubr.f32.mxu0 0.0
      %524 = vmatmul.mubr.f32.gmra.mrb[0].mxu0 %v340
      %v525 = vpop.f32.mrb[0].mxu0
      %v526 = vadd.f32 0.0, %v525
      %v527 = vpop.f32.mrb[0].mxu0
      %528 = vmatprep.mubr.f32.mxu0 0.0
      %529 = vmatmul.mubr.f32.gmra.mrb[0].mxu0 %v343
      %v530 = vpop.f32.mrb[0].mxu0
      %v531 = vadd.f32 0.0, %v530
      %v532 = vpop.f32.mrb[0].mxu0
      %533 = vmatprep.mubr.f32.mxu0 0.0
      %534 = vmatmul.mubr.f32.gmra.mrb[0].mxu0 %v452
      %v535 = vpop.f32.mrb[0].mxu0
      %v536 = vadd.f32 0.0, %v535
      %v537 = vpop.f32.mrb[0].mxu0
      %538 = vdwg.mxu0
      %v539 = vadd.f32 %v412, %v521
      %v540 = vadd.f32 %v417, %v526
      %v541 = vadd.f32 %v422, %v531
      %v542 = vadd.f32 %v427, %v536
      %v544 = vrot.slane %v321, 1
      %v545 = vrot.slane %v322, 1
      %v546 = vsel %vm434, %v544, %v545
      %v547 = vld [vmem:[%s2 + $0x30] sm:$0xff]
      %v548 = vld [vmem:[%s2 + $0x38] sm:$0xff]
      %v549 = vsel %vm332, %v440, 0
      %v551 = vsel %vm332, %v443, 0
      %v553 = vsel %vm332, %v446, 0
      %v555 = vsel %vm332, %v546, 0
      %557 = vmatprep.subr.mxu0 0.0
      %558 = vmatpush1.msra.mxu0 %v547
      %559 = vmatprep.subr.mxu0 0.0
      %560 = vmatpush1.msra.mxu0 %v548
      %561 = vmatprep.subr.mxu0 0.0
      %562 = vmatpush1.msra.mxu0 0.0
      %563 = vmatprep.subr.mxu0 0.0
      %564 = vmatpush1.msra.mxu0 0.0
      %565 = vmatprep.subr.mxu0 0.0
      %566 = vmatpush1.msra.mxu0 0.0
      %567 = vmatprep.subr.mxu0 0.0
      %568 = vmatpush1.msra.mxu0 0.0
      %569 = vmatprep.subr.mxu0 0.0
      %570 = vmatpush1.msra.mxu0 0.0
      %571 = vmatprep.subr.mxu0 0.0
      %572 = vmatpush1.msra.mxu0 0.0
      %573 = vmatprep.subr.mxu0 0.0
      %574 = vmatpush1.msra.mxu0 0.0
      %575 = vmatprep.subr.mxu0 0.0
      %576 = vmatpush1.msra.mxu0 0.0
      %577 = vmatprep.subr.mxu0 0.0
      %578 = vmatpush1.msra.mxu0 0.0
      %579 = vmatprep.subr.mxu0 0.0
      %580 = vmatpush1.msra.mxu0 0.0
      %581 = vmatprep.subr.mxu0 0.0
      %582 = vmatpush1.msra.mxu0 0.0
      %583 = vmatprep.subr.mxu0 0.0
      %584 = vmatpush1.msra.mxu0 0.0
      %585 = vmatprep.subr.mxu0 0.0
      %586 = vmatpush1.msra.mxu0 0.0
      %587 = vmatprep.subr.mxu0 0.0
      %588 = vmatpush1.msra.mxu0 0.0
      %589 = vmatprep.subr.mxu0 0.0
      %590 = vmatpush1.msra.mxu0 0.0
      %591 = vmatprep.subr.mxu0 0.0
      %592 = vmatpush1.msra.mxu0 0.0
      %593 = vmatprep.subr.mxu0 0.0
      %594 = vmatpush1.msra.mxu0 0.0
      %595 = vmatprep.subr.mxu0 0.0
      %596 = vmatpush1.msra.mxu0 0.0
      %597 = vmatprep.subr.mxu0 0.0
      %598 = vmatpush1.msra.mxu0 0.0
      %599 = vmatprep.subr.mxu0 0.0
      %600 = vmatpush1.msra.mxu0 0.0
      %601 = vmatprep.subr.mxu0 0.0
      %602 = vmatpush1.msra.mxu0 0.0
      %603 = vmatprep.subr.mxu0 0.0
      %604 = vmatpush1.msra.mxu0 0.0
      %605 = vmatprep.subr.mxu0 0.0
      %606 = vmatpush1.msra.mxu0 0.0
      %607 = vmatprep.subr.mxu0 0.0
      %608 = vmatpush1.msra.mxu0 0.0
      %609 = vmatprep.subr.mxu0 0.0
      %610 = vmatpush1.msra.mxu0 0.0
      %611 = vmatprep.subr.mxu0 0.0
      %612 = vmatpush1.msra.mxu0 0.0
      %613 = vmatprep.subr.mxu0 0.0
      %614 = vmatpush1.msra.mxu0 0.0
      %615 = vmatprep.subr.mxu0 0.0
      %616 = vmatpush1.msra.mxu0 0.0
      %617 = vmatprep.subr.mxu0 0.0
      %618 = vmatpush1.msra.mxu0 0.0
      %619 = vmatprep.subr.mxu0 0.0
      %620 = vmatpush1.msra.mxu0 0.0
      %621 = vmatprep.mubr.f32.mxu0 0.0
      %622 = vmatmul.mubr.f32.gmra.mrb[0].mxu0 %v549
      %v623 = vpop.f32.mrb[0].mxu0
      %v624 = vadd.f32 0.0, %v623
      %v625 = vpop.f32.mrb[0].mxu0
      %626 = vmatprep.mubr.f32.mxu0 0.0
      %627 = vmatmul.mubr.f32.gmra.mrb[0].mxu0 %v551
      %v628 = vpop.f32.mrb[0].mxu0
      %v629 = vadd.f32 0.0, %v628
      %v630 = vpop.f32.mrb[0].mxu0
      %631 = vmatprep.mubr.f32.mxu0 0.0
      %632 = vmatmul.mubr.f32.gmra.mrb[0].mxu0 %v553
      %v633 = vpop.f32.mrb[0].mxu0
      %v634 = vadd.f32 0.0, %v633
      %v635 = vpop.f32.mrb[0].mxu0
      %636 = vmatprep.mubr.f32.mxu0 0.0
      %637 = vmatmul.mubr.f32.gmra.mrb[0].mxu0 %v555
      %v638 = vpop.f32.mrb[0].mxu0
      %v639 = vadd.f32 0.0, %v638
      %v640 = vpop.f32.mrb[0].mxu0
      %641 = vdwg.mxu0
      %v642 = vsel %vm332, %v437, 0
      %644 = vmatprep.subr.mxu0 0.0
      %645 = vmatpush1.msra.mxu0 %v447
      %646 = vmatprep.subr.mxu0 0.0
      %647 = vmatpush1.msra.mxu0 %v448
      %648 = vmatprep.subr.mxu0 0.0
      %649 = vmatpush1.msra.mxu0 0.0
      %650 = vmatprep.subr.mxu0 0.0
      %651 = vmatpush1.msra.mxu0 0.0
      %652 = vmatprep.subr.mxu0 0.0
      %653 = vmatpush1.msra.mxu0 0.0
      %654 = vmatprep.subr.mxu0 0.0
      %655 = vmatpush1.msra.mxu0 0.0
      %656 = vmatprep.subr.mxu0 0.0
      %657 = vmatpush1.msra.mxu0 0.0
      %658 = vmatprep.subr.mxu0 0.0
      %659 = vmatpush1.msra.mxu0 0.0
      %660 = vmatprep.subr.mxu0 0.0
      %661 = vmatpush1.msra.mxu0 0.0
      %662 = vmatprep.subr.mxu0 0.0
      %663 = vmatpush1.msra.mxu0 0.0
      %664 = vmatprep.subr.mxu0 0.0
      %665 = vmatpush1.msra.mxu0 0.0
      %666 = vmatprep.subr.mxu0 0.0
      %667 = vmatpush1.msra.mxu0 0.0
      %668 = vmatprep.subr.mxu0 0.0
      %669 = vmatpush1.msra.mxu0 0.0
      %670 = vmatprep.subr.mxu0 0.0
      %671 = vmatpush1.msra.mxu0 0.0
      %672 = vmatprep.subr.mxu0 0.0
      %673 = vmatpush1.msra.mxu0 0.0
      %674 = vmatprep.subr.mxu0 0.0
      %675 = vmatpush1.msra.mxu0 0.0
      %676 = vmatprep.subr.mxu0 0.0
      %677 = vmatpush1.msra.mxu0 0.0
      %678 = vmatprep.subr.mxu0 0.0
      %679 = vmatpush1.msra.mxu0 0.0
      %680 = vmatprep.subr.mxu0 0.0
      %681 = vmatpush1.msra.mxu0 0.0
      %682 = vmatprep.subr.mxu0 0.0
      %683 = vmatpush1.msra.mxu0 0.0
      %684 = vmatprep.subr.mxu0 0.0
      %685 = vmatpush1.msra.mxu0 0.0
      %686 = vmatprep.subr.mxu0 0.0
      %687 = vmatpush1.msra.mxu0 0.0
      %688 = vmatprep.subr.mxu0 0.0
      %689 = vmatpush1.msra.mxu0 0.0
      %690 = vmatprep.subr.mxu0 0.0
      %691 = vmatpush1.msra.mxu0 0.0
      %692 = vmatprep.subr.mxu0 0.0
      %693 = vmatpush1.msra.mxu0 0.0
      %694 = vmatprep.subr.mxu0 0.0
      %695 = vmatpush1.msra.mxu0 0.0
      %696 = vmatprep.subr.mxu0 0.0
      %697 = vmatpush1.msra.mxu0 0.0
      %698 = vmatprep.subr.mxu0 0.0
      %699 = vmatpush1.msra.mxu0 0.0
      %700 = vmatprep.subr.mxu0 0.0
      %701 = vmatpush1.msra.mxu0 0.0
      %702 = vmatprep.subr.mxu0 0.0
      %703 = vmatpush1.msra.mxu0 0.0
      %704 = vmatprep.subr.mxu0 0.0
      %705 = vmatpush1.msra.mxu0 0.0
      %706 = vmatprep.subr.mxu0 0.0
      %707 = vmatpush1.msra.mxu0 0.0
      %708 = vmatprep.mubr.f32.mxu0 0.0
      %709 = vmatmul.mubr.f32.gmra.mrb[0].mxu0 %v642
      %v710 = vpop.f32.mrb[0].mxu0
      %v711 = vadd.f32 %v624, %v710
      %v712 = vpop.f32.mrb[0].mxu0
      %713 = vmatprep.mubr.f32.mxu0 0.0
      %714 = vmatmul.mubr.f32.gmra.mrb[0].mxu0 %v549
      %v715 = vpop.f32.mrb[0].mxu0
      %v716 = vadd.f32 %v629, %v715
      %v717 = vpop.f32.mrb[0].mxu0
      %718 = vmatprep.mubr.f32.mxu0 0.0
      %719 = vmatmul.mubr.f32.gmra.mrb[0].mxu0 %v551
      %v720 = vpop.f32.mrb[0].mxu0
      %v721 = vadd.f32 %v634, %v720
      %v722 = vpop.f32.mrb[0].mxu0
      %723 = vmatprep.mubr.f32.mxu0 0.0
      %724 = vmatmul.mubr.f32.gmra.mrb[0].mxu0 %v553
      %v725 = vpop.f32.mrb[0].mxu0
      %v726 = vadd.f32 %v639, %v725
      %v727 = vpop.f32.mrb[0].mxu0
      %728 = vdwg.mxu0
      %v729 = vadd.f32 %v539, %v711
      %v730 = vadd.f32 %v540, %v716
      %v731 = vadd.f32 %v541, %v721
      %v732 = vadd.f32 %v542, %v726
      %733 = vst [vmem:[%s311] sm:$0xff] %v729
      %734 = vst [vmem:[%s311 + $0x8] sm:$0xff] %v730
      %735 = vst [vmem:[%s311 + $0x10] sm:$0xff] %v731
      %736 = vst [vmem:[%s311 + $0x18] sm:$0xff] %v732
      %s737 = smul.u32 4, %s20
      %p738 = scmp.lt.s32.totalorder %s19, 1
      %s739 = scalar_select %p738, %s19, 1
      %p740 = scmp.lt.s32.totalorder %s737, 7
      %s741 = scalar_select %p740, %s737, 7
      %s742 = smul.addr %s739, 8
      %s743 = sadd.s32 %s741, %s742
      %s744 = smul.addr %s743, 8
      %s745 = scalar_lea.vmem %s4, %s744
      // Predicated region
      $region37: #{downsample2d.1} parent=35 // pred_check
        %p746 = pneg %p149
      $region38: #{downsample2d.1} parent=35 // pred_check_branch
        %748 = sbr.rel (%p746) target = $region40
      $region39: #{downsample2d.1} parent=35 // pred_region
        %s749 = smul.u32 4, %s20
      $region40: #{downsample2d.1} parent=35 // pred_fallthru
        _
    $region36: #{downsample2d.1} parent=5 // pred_fallthru
      _
    %p750 = scmp.le.s32.totalorder 2, %s10
    // Predicated region
    $region41: #{downsample2d.1} parent=5 // pred_check
      %p751 = pneg %p750
    $region42: #{downsample2d.1} parent=5 // pred_check_branch
      %753 = sbr.rel (%p751) target = $region44
    $region43: #{downsample2d.1} parent=5 // pred_region
      %s754 = ssub.s32 %s10, 2
      // Predicated region
      $region45: #{downsample2d.1} parent=43 // pred_check
        %p755 = pneg %p155
      $region46: #{downsample2d.1} parent=43 // pred_check_branch
        %757 = sbr.rel (%p755) target = $region48
      $region47: #{downsample2d.1} parent=43 // pred_region
        %s758 = smul.u32 4, %s22
        %p759 = scmp.lt.s32.totalorder %s21, 1
        %s760 = scalar_select %p759, %s21, 1
        %p761 = scmp.lt.s32.totalorder %s758, 7
        %s762 = scalar_select %p761, %s758, 7
        %s763 = smul.addr %s760, 8
        %s764 = sadd.s32 %s762, %s763
        %s765 = smul.addr %s764, 8
        %s766 = scalar_lea.vmem %s4, %s765
      $region48: #{downsample2d.1} parent=43 // pred_fallthru
        _
    $region44: #{downsample2d.1} parent=5 // pred_fallthru
      _
  $region6: #{downsample2d.1} parent=0 // loop_footer
    %s14 = sadd.s32 1, %s10
  $region7: #{downsample2d.1} parent=0 // loop_footer_branch
    %9 = sbr.rel target = $region3
  $region8: #{downsample2d.1} parent=0 // loop_exit
    _

</llo_original>
